<compile_context>
chip_gen: v7x
topology: tpu7x:2x2x1
jax: 0.10.0
libtpu: 0.0.40
codegen_flags: <defaults>
</compile_context>

<pallas_src>
import functools

import jax
import jax.numpy as jnp
from jax.experimental import pallas as pl
from jax.experimental.pallas import tpu as pltpu

LN_EPS = 1e-5
NEG_INF = -1e9
COMPUTE_DTYPE = jnp.bfloat16   # matmul-input dtype (f32 accumulation everywhere)


def _layer_norm_f32(v, g, b):
    mu = jnp.mean(v, axis=-1, keepdims=True)
    var = jnp.mean((v - mu) ** 2, axis=-1, keepdims=True)
    return (v - mu) * jax.lax.rsqrt(var + LN_EPS) * g + b


def _replicated_spec(shape):
    """BlockSpec for a weight that is identical for every (b, j) grid step."""
    ndim = len(shape)
    return pl.BlockSpec(shape, lambda b, j, n=ndim: (0,) * n)


# --------------------------------------------------------------------------- #
# Kernel A: LN1 + fused Q/K/V projections (per batch, per seq tile)
# --------------------------------------------------------------------------- #
def qkv_proj_kernel(x_ref, g_ref, b_ref,
                    qw_ref, qb_ref, kw_ref, kb_ref, vw_ref, vb_ref,
                    q_out, k_out, v_out, *, scaling):
    x = x_ref[0].astype(jnp.float32)                      # (ts, H)
    h = _layer_norm_f32(x, g_ref[0], b_ref[0])
    hb = h.astype(COMPUTE_DTYPE)                          # bf16 MXU inputs
    q = jnp.dot(hb, qw_ref[...], preferred_element_type=jnp.float32) + qb_ref[0]
    k = jnp.dot(hb, kw_ref[...], preferred_element_type=jnp.float32) + kb_ref[0]
    v = jnp.dot(hb, vw_ref[...], preferred_element_type=jnp.float32) + vb_ref[0]
    q_out[0] = (q * scaling).astype(q_out.dtype)          # OPT scales q after bias
    k_out[0] = k.astype(k_out.dtype)
    v_out[0] = v.astype(v_out.dtype)


# --------------------------------------------------------------------------- #
# Kernel B: batched-head attention + out_proj + residual + LN2 + FFN + residual
# --------------------------------------------------------------------------- #
def attn_ffn_kernel(*refs, num_heads, head_dim, q_tile, causal, has_mask):
    if has_mask:
        (x_ref, q_ref, k_ref, v_ref, mask_ref,
         ow_ref, ob_ref, g2_ref, b2_ref,
         f1w_ref, f1b_ref, f2w_ref, f2b_ref, out_ref) = refs
    else:
        (x_ref, q_ref, k_ref, v_ref,
         ow_ref, ob_ref, g2_ref, b2_ref,
         f1w_ref, f1b_ref, f2w_ref, f2b_ref, out_ref) = refs
        mask_ref = None

    nh, hd = num_heads, head_dim
    tq = q_ref.shape[2]
    s_kv = k_ref.shape[2]

    x = x_ref[0].astype(jnp.float32)                      # (tq, H) residual
    q3 = q_ref[0]                                         # (nh, tq, hd) bf16
    k3 = k_ref[0]                                         # (nh, S,  hd) bf16
    v3 = v_ref[0]                                         # (nh, S,  hd) bf16

    # All heads in one batched MXU op (no per-head loop, no concat).
    scores = jnp.einsum("hqd,hkd->hqk", q3, k3,
                        preferred_element_type=jnp.float32)   # (nh, tq, S)

    if mask_ref is not None:
        scores = scores + mask_ref[0][None, :, :].astype(jnp.float32)
    if causal:
        q0 = pl.program_id(1) * q_tile
        rows = q0 + jax.lax.broadcasted_iota(jnp.int32, (tq, s_kv), 0)
        cols = jax.lax.broadcasted_iota(jnp.int32, (tq, s_kv), 1)
        cmask = jnp.where(cols <= rows, 0.0, NEG_INF).astype(jnp.float32)
        scores = scores + cmask[None, :, :]

    m = jnp.max(scores, axis=-1, keepdims=True)
    p = jnp.exp(scores - m)
    l = jnp.sum(p, axis=-1, keepdims=True)
    p = p * pl.reciprocal(l, approx=True)                 # EUP vrcp, frees VALU

    ctx = jnp.einsum("hqk,hkd->hqd", p.astype(v3.dtype), v3,
                     preferred_element_type=jnp.float32)      # (nh, tq, hd)

    # out_proj fused per head (ow passed pre-reshaped to (nh, hd, H)), then
    # reduced over heads — replaces the concatenate + (tq,H)x(H,H) dot.
    po = jnp.einsum("hqd,hdo->hqo", ctx.astype(COMPUTE_DTYPE), ow_ref[...],
                    preferred_element_type=jnp.float32)       # (nh, tq, H)
    attn_out = jnp.sum(po, axis=0) + ob_ref[0]                # (tq, H)

    h1 = x + attn_out                                     # dropout p=0.0 == identity

    h2 = _layer_norm_f32(h1, g2_ref[0], b2_ref[0])
    f = jnp.dot(h2.astype(COMPUTE_DTYPE), f1w_ref[...],
                preferred_element_type=jnp.float32) + f1b_ref[0]
    f = jnp.maximum(f, 0.0)                               # relu activation_function
    f = jnp.dot(f.astype(COMPUTE_DTYPE), f2w_ref[...],
                preferred_element_type=jnp.float32) + f2b_ref[0]

    out_ref[0] = (h1 + f).astype(out_ref.dtype)


# --------------------------------------------------------------------------- #
# One OPT decoder layer = 2 pallas_calls
# --------------------------------------------------------------------------- #
def opt_layer_pallas(x, mask_bss, p, *, num_heads, head_dim, causal=False, q_tile=None):
    B, S, H = x.shape
    F = p["f1w"].shape[1]
    nh, hd = num_heads, head_dim
    assert nh * hd == H

    if q_tile is None:
        q_tile = 128 if S % 128 == 0 else S
    assert S % q_tile == 0
    n_tiles = S // q_tile

    wdt = COMPUTE_DTYPE
    qw = p["qw"].astype(wdt)
    kw = p["kw"].astype(wdt)
    vw = p["vw"].astype(wdt)
    ow3 = p["ow"].astype(wdt).reshape(nh, hd, H)          # per-head out_proj weight
    f1w = p["f1w"].astype(wdt)
    f2w = p["f2w"].astype(wdt)

    # ---- kernel A: LN1 + QKV projection ----
    tile_spec = pl.BlockSpec((1, q_tile, H), lambda b, j: (b, j, 0))
    qkv_in_specs = [
        tile_spec,
        _replicated_spec((1, H)), _replicated_spec((1, H)),
        _replicated_spec((H, H)), _replicated_spec((1, H)),
        _replicated_spec((H, H)), _replicated_spec((1, H)),
        _replicated_spec((H, H)), _replicated_spec((1, H)),
    ]
    out_sds = jax.ShapeDtypeStruct((B, S, H), wdt)
    q, k, v = pl.pallas_call(
        functools.partial(qkv_proj_kernel, scaling=hd ** -0.5),
        out_shape=(out_sds, out_sds, out_sds),
        grid_spec=pltpu.PrefetchScalarGridSpec(
            num_scalar_prefetch=0, grid=(B, n_tiles),
            in_specs=qkv_in_specs,
            out_specs=(tile_spec, tile_spec, tile_spec)),
        compiler_params=pltpu.CompilerParams(
            dimension_semantics=("parallel", "parallel")),
    )(x, p["ln1_g"], p["ln1_b"], qw, p["qb"], kw, p["kb"], vw, p["vb"])

    # Head-major layout for the batched attention einsums (cheap XLA transpose).
    q = q.reshape(B, S, nh, hd).transpose(0, 2, 1, 3)     # (B, nh, S, hd)
    k = k.reshape(B, S, nh, hd).transpose(0, 2, 1, 3)
    v = v.reshape(B, S, nh, hd).transpose(0, 2, 1, 3)

    # ---- kernel B: attention + out_proj + FFN ----
    has_mask = mask_bss is not None
    in_specs = [
        pl.BlockSpec((1, q_tile, H), lambda b, j: (b, j, 0)),        # residual x
        pl.BlockSpec((1, nh, q_tile, hd), lambda b, j: (b, 0, j, 0)),  # q tile
        pl.BlockSpec((1, nh, S, hd), lambda b, j: (b, 0, 0, 0)),       # k (full S)
        pl.BlockSpec((1, nh, S, hd), lambda b, j: (b, 0, 0, 0)),       # v (full S)
    ]
    args = [x, q, k, v]
    if has_mask:
        in_specs.append(pl.BlockSpec((1, q_tile, S), lambda b, j: (b, j, 0)))
        args.append(mask_bss)
    in_specs += [
        _replicated_spec((nh, hd, H)), _replicated_spec((1, H)),     # out_proj
        _replicated_spec((1, H)), _replicated_spec((1, H)),          # ln2
        _replicated_spec((H, F)), _replicated_spec((1, F)),          # fc1
        _replicated_spec((F, H)), _replicated_spec((1, H)),          # fc2
    ]
    args += [ow3, p["ob"], p["ln2_g"], p["ln2_b"], f1w, p["f1b"], f2w, p["f2b"]]

    kernel = functools.partial(attn_ffn_kernel, num_heads=nh, head_dim=hd,
                               q_tile=q_tile, causal=causal, has_mask=has_mask)
    return pl.pallas_call(
        kernel,
        out_shape=jax.ShapeDtypeStruct((B, S, H), x.dtype),
        grid_spec=pltpu.PrefetchScalarGridSpec(
            num_scalar_prefetch=0, grid=(B, n_tiles),
            in_specs=in_specs,
            out_specs=pl.BlockSpec((1, q_tile, H), lambda b, j: (b, j, 0))),
        compiler_params=pltpu.CompilerParams(
            dimension_semantics=("parallel", "parallel")),
    )(*args)


# --------------------------------------------------------------------------- #
# OPTBlock.forward equivalent
# --------------------------------------------------------------------------- #
def opt_block_forward(hidden_states, layer_params, attention_mask=None, *,
                      num_heads, head_dim, causal=False, q_tile=None,
                      output_hidden_states=False, output_attentions=False,
                      use_cache=False):
    """Returns (hidden_states, all_hidden_states, all_self_attns)."""
    B, S, H = hidden_states.shape
    if attention_mask is not None:
        assert attention_mask.shape in ((B, 1, S, S), (B, S, S)), attention_mask.shape
        mask_bss = attention_mask.reshape(B, S, S).astype(jnp.float32)
    else:
        mask_bss = None

    all_hidden_states = ()
    all_self_attns = ()
    for p in layer_params:
        if output_hidden_states:
            all_hidden_states += (hidden_states,)
        hidden_states = opt_layer_pallas(hidden_states, mask_bss, p,
                                         num_heads=num_heads, head_dim=head_dim,
                                         causal=causal, q_tile=q_tile)
    return hidden_states, all_hidden_states, all_self_attns


# --------------------------------------------------------------------------- #
# Pure-JAX reference (mirrors the kernel's bf16 casts) — correctness check only
# --------------------------------------------------------------------------- #
def opt_layer_reference(x, mask_bss, p, *, num_heads, head_dim, causal=False):
    B, S, H = x.shape
    nh, hd = num_heads, head_dim
    cdt = COMPUTE_DTYPE
    xf = x.astype(jnp.float32)
    h = _layer_norm_f32(xf, p["ln1_g"][0], p["ln1_b"][0]).astype(cdt)
    q = (jnp.einsum("bsk,kh->bsh", h, p["qw"].astype(cdt),
                    preferred_element_type=jnp.float32) + p["qb"][0]) * (hd ** -0.5)
    k = jnp.einsum("bsk,kh->bsh", h, p["kw"].astype(cdt),
                   preferred_element_type=jnp.float32) + p["kb"][0]
    v = jnp.einsum("bsk,kh->bsh", h, p["vw"].astype(cdt),
                   preferred_element_type=jnp.float32) + p["vb"][0]
    q = q.astype(cdt).reshape(B, S, nh, hd).transpose(0, 2, 1, 3)
    k = k.astype(cdt).reshape(B, S, nh, hd).transpose(0, 2, 1, 3)
    v = v.astype(cdt).reshape(B, S, nh, hd).transpose(0, 2, 1, 3)
    scores = jnp.einsum("bhqd,bhkd->bhqk", q, k, preferred_element_type=jnp.float32)
    if mask_bss is not None:
        scores = scores + mask_bss[:, None].astype(jnp.float32)
    if causal:
        rows = jnp.arange(S)[:, None]
        cols = jnp.arange(S)[None, :]
        scores = scores + jnp.where(cols <= rows, 0.0, NEG_INF)[None, None]
    scores = scores - jnp.max(scores, axis=-1, keepdims=True)
    pr = jnp.exp(scores)
    pr = pr / jnp.sum(pr, axis=-1, keepdims=True)
    ctx = jnp.einsum("bhqk,bhkd->bhqd", pr.astype(cdt), v,
                     preferred_element_type=jnp.float32)
    ow3 = p["ow"].astype(cdt).reshape(nh, hd, H)
    attn = jnp.einsum("bhqd,hdo->bqo", ctx.astype(cdt), ow3,
                      preferred_element_type=jnp.float32) + p["ob"][0]
    h1 = xf + attn
    h2 = _layer_norm_f32(h1, p["ln2_g"][0], p["ln2_b"][0]).astype(cdt)
    f = jnp.einsum("bsk,kf->bsf", h2, p["f1w"].astype(cdt),
                   preferred_element_type=jnp.float32) + p["f1b"][0]
    f = jnp.maximum(f, 0.0).astype(cdt)
    f = jnp.einsum("bsf,fh->bsh", f, p["f2w"].astype(cdt),
                   preferred_element_type=jnp.float32) + p["f2b"][0]
    return (h1 + f).astype(x.dtype)


def init_opt_block_params(key, num_layers, hidden_size, ffn_dim, dtype=jnp.float32):
    params = []
    for i in range(num_layers):
        k = jax.random.fold_in(key, i)
        ks = jax.random.split(k, 8)
        scale = 0.02
        p = {
            "ln1_g": jnp.ones((1, hidden_size), dtype),
            "ln1_b": jnp.zeros((1, hidden_size), dtype),
            "qw": scale * jax.random.normal(ks[0], (hidden_size, hidden_size), dtype),
            "qb": jnp.zeros((1, hidden_size), dtype),
            "kw": scale * jax.random.normal(ks[1], (hidden_size, hidden_size), dtype),
            "kb": jnp.zeros((1, hidden_size), dtype),
            "vw": scale * jax.random.normal(ks[2], (hidden_size, hidden_size), dtype),
            "vb": jnp.zeros((1, hidden_size), dtype),
            "ow": scale * jax.random.normal(ks[3], (hidden_size, hidden_size), dtype),
            "ob": jnp.zeros((1, hidden_size), dtype),
            "ln2_g": jnp.ones((1, hidden_size), dtype),
            "ln2_b": jnp.zeros((1, hidden_size), dtype),
            "f1w": scale * jax.random.normal(ks[4], (hidden_size, ffn_dim), dtype),
            "f1b": jnp.zeros((1, ffn_dim), dtype),
            "f2w": scale * jax.random.normal(ks[5], (ffn_dim, hidden_size), dtype),
            "f2b": jnp.zeros((1, hidden_size), dtype),
        }
        params.append(p)
    return params


if __name__ == "__main__":
    # Small shapes consistent with OPTBlock(num_layers, hidden_size, head_dim, ffn_dim)
    num_layers = 2
    batch, seq = 2, 16
    hidden_size, head_dim, ffn_dim = 32, 8, 64
    num_heads = hidden_size // head_dim
    q_tile = 8   # 2 query tiles -> exercises the tiled attention path + 2nd grid axis

    key = jax.random.PRNGKey(0)
    kx, kp = jax.random.split(key)
    hidden_states = jax.random.normal(kx, (batch, seq, hidden_size), jnp.float32)

    # HF convention: additive causal mask [B, 1, S, S]
    causal_tri = jnp.tril(jnp.ones((seq, seq), jnp.float32))
    attention_mask = jnp.where(causal_tri[None, None] > 0, 0.0, NEG_INF).astype(jnp.float32)
    attention_mask = jnp.broadcast_to(attention_mask, (batch, 1, seq, seq))

    params = init_opt_block_params(kp, num_layers, hidden_size, ffn_dim)

    # Path 1: explicit HF-style additive mask (module's default calling convention).
    out_masked, all_hs, all_attn = opt_block_forward(
        hidden_states, params, attention_mask=attention_mask,
        num_heads=num_heads, head_dim=head_dim, q_tile=q_tile)
    out_masked = jax.block_until_ready(out_masked)

    # Path 2: mask generated in-kernel (no dense [B,S,S] mask DMA).
    out_causal, _, _ = opt_block_forward(
        hidden_states, params, attention_mask=None, causal=True,
        num_heads=num_heads, head_dim=head_dim, q_tile=q_tile)
    out_causal = jax.block_until_ready(out_causal)

    # Pure-JAX reference with the same bf16 casting.
    out_ref = hidden_states
    mask_ref = attention_mask.reshape(batch, seq, seq)
    for p in params:
        out_ref = opt_layer_reference(out_ref, mask_ref, p,
                                      num_heads=num_heads, head_dim=head_dim)

    assert out_masked.shape == (batch, seq, hidden_size)
    assert bool(jnp.all(jnp.isfinite(out_masked)))
    assert bool(jnp.allclose(out_masked, out_causal, atol=1e-4, rtol=1e-4)), \
        "explicit-mask and in-kernel-causal paths disagree"
    assert bool(jnp.allclose(out_masked, out_ref, atol=2e-2, rtol=2e-2)), \
        "kernel output mismatches pure-JAX reference"
    print("KERNEL_OK")
</pallas_src>

<mosaic_0001>
module attributes {stable_mosaic.version = 11 : i64} {
  func.func @qkv_proj_kernel(%arg0: i32, %arg1: i32, %arg2: memref<1x8x32xf32, #tpu.memory_space<vmem>>, %arg3: memref<1x32xf32, #tpu.memory_space<vmem>>, %arg4: memref<1x32xf32, #tpu.memory_space<vmem>>, %arg5: memref<32x32xbf16, #tpu.memory_space<vmem>>, %arg6: memref<1x32xf32, #tpu.memory_space<vmem>>, %arg7: memref<32x32xbf16, #tpu.memory_space<vmem>>, %arg8: memref<1x32xf32, #tpu.memory_space<vmem>>, %arg9: memref<32x32xbf16, #tpu.memory_space<vmem>>, %arg10: memref<1x32xf32, #tpu.memory_space<vmem>>, %arg11: memref<1x8x32xbf16, #tpu.memory_space<vmem>>, %arg12: memref<1x8x32xbf16, #tpu.memory_space<vmem>>, %arg13: memref<1x8x32xbf16, #tpu.memory_space<vmem>>) attributes {dimension_semantics = [#tpu.dimension_semantics<parallel>, #tpu.dimension_semantics<parallel>], iteration_bounds = array<i64: 2, 2>, scalar_prefetch = 0 : i64, scratch_operands = 0 : i64, tpu.core_type = #tpu.core_type<tc>, window_params = [{transform_indices = @transform_0, window_bounds = array<i64: 1, 8, 32>}, {pipeline_mode = #tpu.pipeline_mode<synchronous>, transform_indices = @transform_1, window_bounds = array<i64: 1, 32>}, {pipeline_mode = #tpu.pipeline_mode<synchronous>, transform_indices = @transform_2, window_bounds = array<i64: 1, 32>}, {pipeline_mode = #tpu.pipeline_mode<synchronous>, transform_indices = @transform_3, window_bounds = array<i64: 32, 32>}, {pipeline_mode = #tpu.pipeline_mode<synchronous>, transform_indices = @transform_4, window_bounds = array<i64: 1, 32>}, {pipeline_mode = #tpu.pipeline_mode<synchronous>, transform_indices = @transform_5, window_bounds = array<i64: 32, 32>}, {pipeline_mode = #tpu.pipeline_mode<synchronous>, transform_indices = @transform_6, window_bounds = array<i64: 1, 32>}, {pipeline_mode = #tpu.pipeline_mode<synchronous>, transform_indices = @transform_7, window_bounds = array<i64: 32, 32>}, {pipeline_mode = #tpu.pipeline_mode<synchronous>, transform_indices = @transform_8, window_bounds = array<i64: 1, 32>}, {transform_indices = @transform_9, window_bounds = array<i64: 1, 8, 32>}, {transform_indices = @transform_10, window_bounds = array<i64: 1, 8, 32>}, {transform_indices = @transform_11, window_bounds = array<i64: 1, 8, 32>}]} {
    %c0 = arith.constant 0 : index
    %c0_0 = arith.constant 0 : index
    %c0_1 = arith.constant 0 : index
    %0 = vector.load %arg2[%c0, %c0_0, %c0_1] : memref<1x8x32xf32, #tpu.memory_space<vmem>>, vector<1x8x32xf32>
    %1 = vector.shape_cast %0 : vector<1x8x32xf32> to vector<8x32xf32>
    %c0_2 = arith.constant 0 : index
    %c0_3 = arith.constant 0 : index
    %2 = vector.load %arg3[%c0_2, %c0_3] : memref<1x32xf32, #tpu.memory_space<vmem>>, vector<1x32xf32>
    %3 = vector.shape_cast %2 : vector<1x32xf32> to vector<32xf32>
    %c0_4 = arith.constant 0 : index
    %c0_5 = arith.constant 0 : index
    %4 = vector.load %arg4[%c0_4, %c0_5] : memref<1x32xf32, #tpu.memory_space<vmem>>, vector<1x32xf32>
    %5 = vector.shape_cast %4 : vector<1x32xf32> to vector<32xf32>
    %cst = arith.constant dense<0.000000e+00> : vector<8xf32>
    %6 = vector.multi_reduction <add>, %1, %cst [1] : vector<8x32xf32> to vector<8xf32>
    %7 = vector.shape_cast %6 : vector<8xf32> to vector<8x1xf32>
    %cst_6 = arith.constant 3.200000e+01 : f32
    %8 = vector.broadcast %cst_6 : f32 to vector<8x1xf32>
    %9 = arith.divf %7, %8 : vector<8x1xf32>
    %10 = vector.broadcast %9 : vector<8x1xf32> to vector<8x32xf32>
    %11 = arith.subf %1, %10 : vector<8x32xf32>
    %12 = arith.mulf %11, %11 : vector<8x32xf32>
    %cst_7 = arith.constant dense<0.000000e+00> : vector<8xf32>
    %13 = vector.multi_reduction <add>, %12, %cst_7 [1] : vector<8x32xf32> to vector<8xf32>
    %14 = vector.shape_cast %13 : vector<8xf32> to vector<8x1xf32>
    %cst_8 = arith.constant 3.200000e+01 : f32
    %15 = vector.broadcast %cst_8 : f32 to vector<8x1xf32>
    %16 = arith.divf %14, %15 : vector<8x1xf32>
    %17 = vector.broadcast %9 : vector<8x1xf32> to vector<8x32xf32>
    %18 = arith.subf %1, %17 : vector<8x32xf32>
    %cst_9 = arith.constant 9.99999974E-6 : f32
    %19 = vector.broadcast %cst_9 : f32 to vector<8x1xf32>
    %20 = arith.addf %16, %19 : vector<8x1xf32>
    %21 = math.rsqrt %20 : vector<8x1xf32>
    %22 = vector.broadcast %21 : vector<8x1xf32> to vector<8x32xf32>
    %23 = arith.mulf %18, %22 : vector<8x32xf32>
    %24 = vector.shape_cast %3 : vector<32xf32> to vector<1x32xf32>
    %25 = vector.broadcast %24 : vector<1x32xf32> to vector<8x32xf32>
    %26 = arith.mulf %23, %25 : vector<8x32xf32>
    %27 = vector.shape_cast %5 : vector<32xf32> to vector<1x32xf32>
    %28 = vector.broadcast %27 : vector<1x32xf32> to vector<8x32xf32>
    %29 = arith.addf %26, %28 : vector<8x32xf32>
    %30 = arith.truncf %29 : vector<8x32xf32> to vector<8x32xbf16>
    %c0_10 = arith.constant 0 : index
    %c0_11 = arith.constant 0 : index
    %31 = vector.load %arg5[%c0_10, %c0_11] : memref<32x32xbf16, #tpu.memory_space<vmem>>, vector<32x32xbf16>
    %cst_12 = arith.constant dense<0.000000e+00> : vector<8x32xf32>
    %32 = tpu.matmul %30, %31, %cst_12 {dimension_numbers = #tpu.dot_dimension_numbers<[1], [0], [0], [1], [0, 0, 1, 1], [], []>} : vector<8x32xbf16>, vector<32x32xbf16>, vector<8x32xf32> -> vector<8x32xf32>
    %c0_13 = arith.constant 0 : index
    %c0_14 = arith.constant 0 : index
    %33 = vector.load %arg6[%c0_13, %c0_14] : memref<1x32xf32, #tpu.memory_space<vmem>>, vector<1x32xf32>
    %34 = vector.shape_cast %33 : vector<1x32xf32> to vector<32xf32>
    %35 = vector.shape_cast %34 : vector<32xf32> to vector<1x32xf32>
    %36 = vector.broadcast %35 : vector<1x32xf32> to vector<8x32xf32>
    %37 = arith.addf %32, %36 : vector<8x32xf32>
    %c0_15 = arith.constant 0 : index
    %c0_16 = arith.constant 0 : index
    %38 = vector.load %arg7[%c0_15, %c0_16] : memref<32x32xbf16, #tpu.memory_space<vmem>>, vector<32x32xbf16>
    %cst_17 = arith.constant dense<0.000000e+00> : vector<8x32xf32>
    %39 = tpu.matmul %30, %38, %cst_17 {dimension_numbers = #tpu.dot_dimension_numbers<[1], [0], [0], [1], [0, 0, 1, 1], [], []>} : vector<8x32xbf16>, vector<32x32xbf16>, vector<8x32xf32> -> vector<8x32xf32>
    %c0_18 = arith.constant 0 : index
    %c0_19 = arith.constant 0 : index
    %40 = vector.load %arg8[%c0_18, %c0_19] : memref<1x32xf32, #tpu.memory_space<vmem>>, vector<1x32xf32>
    %41 = vector.shape_cast %40 : vector<1x32xf32> to vector<32xf32>
    %42 = vector.shape_cast %41 : vector<32xf32> to vector<1x32xf32>
    %43 = vector.broadcast %42 : vector<1x32xf32> to vector<8x32xf32>
    %44 = arith.addf %39, %43 : vector<8x32xf32>
    %c0_20 = arith.constant 0 : index
    %c0_21 = arith.constant 0 : index
    %45 = vector.load %arg9[%c0_20, %c0_21] : memref<32x32xbf16, #tpu.memory_space<vmem>>, vector<32x32xbf16>
    %cst_22 = arith.constant dense<0.000000e+00> : vector<8x32xf32>
    %46 = tpu.matmul %30, %45, %cst_22 {dimension_numbers = #tpu.dot_dimension_numbers<[1], [0], [0], [1], [0, 0, 1, 1], [], []>} : vector<8x32xbf16>, vector<32x32xbf16>, vector<8x32xf32> -> vector<8x32xf32>
    %c0_23 = arith.constant 0 : index
    %c0_24 = arith.constant 0 : index
    %47 = vector.load %arg10[%c0_23, %c0_24] : memref<1x32xf32, #tpu.memory_space<vmem>>, vector<1x32xf32>
    %48 = vector.shape_cast %47 : vector<1x32xf32> to vector<32xf32>
    %49 = vector.shape_cast %48 : vector<32xf32> to vector<1x32xf32>
    %50 = vector.broadcast %49 : vector<1x32xf32> to vector<8x32xf32>
    %51 = arith.addf %46, %50 : vector<8x32xf32>
    %cst_25 = arith.constant 0.353553385 : f32
    %52 = vector.broadcast %cst_25 : f32 to vector<8x32xf32>
    %53 = arith.mulf %37, %52 : vector<8x32xf32>
    %54 = arith.truncf %53 : vector<8x32xf32> to vector<8x32xbf16>
    %c0_26 = arith.constant 0 : index
    %c0_27 = arith.constant 0 : index
    %c0_28 = arith.constant 0 : index
    %55 = vector.load %arg11[%c0_26, %c0_27, %c0_28] : memref<1x8x32xbf16, #tpu.memory_space<vmem>>, vector<1x8x32xbf16>
    %56 = vector.shape_cast %55 : vector<1x8x32xbf16> to vector<8x32xbf16>
    %57 = vector.shape_cast %54 : vector<8x32xbf16> to vector<1x8x32xbf16>
    tpu.vector_store %arg11[%c0_26, %c0_27, %c0_28], %57 {strides = array<i32>} : memref<1x8x32xbf16, #tpu.memory_space<vmem>>, vector<1x8x32xbf16>,
    %58 = arith.truncf %44 : vector<8x32xf32> to vector<8x32xbf16>
    %c0_29 = arith.constant 0 : index
    %c0_30 = arith.constant 0 : index
    %c0_31 = arith.constant 0 : index
    %59 = vector.load %arg12[%c0_29, %c0_30, %c0_31] : memref<1x8x32xbf16, #tpu.memory_space<vmem>>, vector<1x8x32xbf16>
    %60 = vector.shape_cast %59 : vector<1x8x32xbf16> to vector<8x32xbf16>
    %61 = vector.shape_cast %58 : vector<8x32xbf16> to vector<1x8x32xbf16>
    tpu.vector_store %arg12[%c0_29, %c0_30, %c0_31], %61 {strides = array<i32>} : memref<1x8x32xbf16, #tpu.memory_space<vmem>>, vector<1x8x32xbf16>,
    %62 = arith.truncf %51 : vector<8x32xf32> to vector<8x32xbf16>
    %c0_32 = arith.constant 0 : index
    %c0_33 = arith.constant 0 : index
    %c0_34 = arith.constant 0 : index
    %63 = vector.load %arg13[%c0_32, %c0_33, %c0_34] : memref<1x8x32xbf16, #tpu.memory_space<vmem>>, vector<1x8x32xbf16>
    %64 = vector.shape_cast %63 : vector<1x8x32xbf16> to vector<8x32xbf16>
    %65 = vector.shape_cast %62 : vector<8x32xbf16> to vector<1x8x32xbf16>
    tpu.vector_store %arg13[%c0_32, %c0_33, %c0_34], %65 {strides = array<i32>} : memref<1x8x32xbf16, #tpu.memory_space<vmem>>, vector<1x8x32xbf16>,
    return
  }
  func.func @transform_0(%arg0: i32, %arg1: i32) -> (i32, i32, i32) {
    %c0_i32 = arith.constant 0 : i32
    %c0_i32_0 = arith.constant 0 : i32
    return %arg0, %arg1, %c0_i32 : i32, i32, i32
  }
  func.func @transform_1(%arg0: i32, %arg1: i32) -> (i32, i32) {
    %c0_i32 = arith.constant 0 : i32
    %c0_i32_0 = arith.constant 0 : i32
    %c0_i32_1 = arith.constant 0 : i32
    return %c0_i32, %c0_i32_0 : i32, i32
  }
  func.func @transform_2(%arg0: i32, %arg1: i32) -> (i32, i32) {
    %c0_i32 = arith.constant 0 : i32
    %c0_i32_0 = arith.constant 0 : i32
    %c0_i32_1 = arith.constant 0 : i32
    return %c0_i32, %c0_i32_0 : i32, i32
  }
  func.func @transform_3(%arg0: i32, %arg1: i32) -> (i32, i32) {
    %c0_i32 = arith.constant 0 : i32
    %c0_i32_0 = arith.constant 0 : i32
    %c0_i32_1 = arith.constant 0 : i32
    return %c0_i32, %c0_i32_0 : i32, i32
  }
  func.func @transform_4(%arg0: i32, %arg1: i32) -> (i32, i32) {
    %c0_i32 = arith.constant 0 : i32
    %c0_i32_0 = arith.constant 0 : i32
    %c0_i32_1 = arith.constant 0 : i32
    return %c0_i32, %c0_i32_0 : i32, i32
  }
  func.func @transform_5(%arg0: i32, %arg1: i32) -> (i32, i32) {
    %c0_i32 = arith.constant 0 : i32
    %c0_i32_0 = arith.constant 0 : i32
    %c0_i32_1 = arith.constant 0 : i32
    return %c0_i32, %c0_i32_0 : i32, i32
  }
  func.func @transform_6(%arg0: i32, %arg1: i32) -> (i32, i32) {
    %c0_i32 = arith.constant 0 : i32
    %c0_i32_0 = arith.constant 0 : i32
    %c0_i32_1 = arith.constant 0 : i32
    return %c0_i32, %c0_i32_0 : i32, i32
  }
  func.func @transform_7(%arg0: i32, %arg1: i32) -> (i32, i32) {
    %c0_i32 = arith.constant 0 : i32
    %c0_i32_0 = arith.constant 0 : i32
    %c0_i32_1 = arith.constant 0 : i32
    return %c0_i32, %c0_i32_0 : i32, i32
  }
  func.func @transform_8(%arg0: i32, %arg1: i32) -> (i32, i32) {
    %c0_i32 = arith.constant 0 : i32
    %c0_i32_0 = arith.constant 0 : i32
    %c0_i32_1 = arith.constant 0 : i32
    return %c0_i32, %c0_i32_0 : i32, i32
  }
  func.func @transform_9(%arg0: i32, %arg1: i32) -> (i32, i32, i32) {
    %c0_i32 = arith.constant 0 : i32
    %c0_i32_0 = arith.constant 0 : i32
    return %arg0, %arg1, %c0_i32 : i32, i32, i32
  }
  func.func @transform_10(%arg0: i32, %arg1: i32) -> (i32, i32, i32) {
    %c0_i32 = arith.constant 0 : i32
    %c0_i32_0 = arith.constant 0 : i32
    return %arg0, %arg1, %c0_i32 : i32, i32, i32
  }
  func.func @transform_11(%arg0: i32, %arg1: i32) -> (i32, i32, i32) {
    %c0_i32 = arith.constant 0 : i32
    %c0_i32_0 = arith.constant 0 : i32
    return %arg0, %arg1, %c0_i32 : i32, i32, i32
  }
}

</mosaic_0001>

<llo_original>
// kernel: tpu_custom_call.1
$region0: #{tpu_custom_call.1}
  #allocation0 [shape = 'u32[]', space=smem, size = 0x4, offset = 0x4, fixed_abs, tag = 'smem constant byte address 0x4 - core index']
  #allocation1 [shape = 'u32[144,128]{1,0:T(1,128)}', space=vmem, size = 0x12000, scoped, tag = 'internal scratch']
  %s0 = inlined_call_operand.hbm [shape: f32[2,16,32], index: 0, kind: input, shape index: {}]
  %s1 = inlined_call_operand.vmem [shape: f32[1,32], index: 1, kind: input, shape index: {}]
  %s2 = inlined_call_operand.vmem [shape: f32[1,32], index: 2, kind: input, shape index: {}]
  %s3 = inlined_call_operand.hbm [shape: bf16[32,32], index: 3, kind: input, shape index: {}]
  %s4 = inlined_call_operand.hbm [shape: f32[1,32], index: 4, kind: input, shape index: {}]
  %s5 = inlined_call_operand.vmem [shape: bf16[32,32], index: 5, kind: input, shape index: {}]
  %s6 = inlined_call_operand.vmem [shape: f32[1,32], index: 6, kind: input, shape index: {}]
  %s7 = inlined_call_operand.hbm [shape: bf16[32,32], index: 7, kind: input, shape index: {}]
  %s8 = inlined_call_operand.vmem [shape: f32[1,32], index: 8, kind: input, shape index: {}]
  %s9 = inlined_call_operand.hbm [shape: bf16[2,16,32], index: 9, kind: output, shape index: {0}]
  %s10 = inlined_call_operand.hbm [shape: bf16[2,16,32], index: 10, kind: output, shape index: {1}]
  %s11 = inlined_call_operand.hbm [shape: bf16[2,16,32], index: 11, kind: output, shape index: {2}]
  %12 = xla_tuple %s9, %s10, %s11
  %s13 = sld [smem:[#allocation0]]
  $region101: #{tpu_custom_call.1} parent=0
    _
  %s15 = ssub.s32 1, %s13
  %s16 = scalar_select 0, %s15, %s13
  $region1: #{tpu_custom_call.1} parent=0
    #allocation2 [shape = 'u8[8192]{0}', space=vmem, size = 0x2000, scoped, tag = 'input window, operand 0']
    #allocation3 [shape = 's32[2]{0}', space=sflag, size = 0x8, scoped, tag = 'scoped memory for tpu_custom_call.1']
    #allocation4 [shape = 's32[2]{0}', space=sflag, size = 0x8, scoped, tag = 'scoped memory for tpu_custom_call.1']
    #allocation5 [shape = 'u8[8192]{0}', space=vmem, size = 0x2000, scoped, tag = 'input window, operand 3, single buffered']
    #allocation6 [shape = 's32[1]{0}', space=sflag, size = 0x4, scoped, tag = 'scoped memory for tpu_custom_call.1']
    #allocation7 [shape = 'u8[512]{0}', space=vmem, size = 0x400, scoped, tag = 'input window, operand 4, single buffered']
    #allocation8 [shape = 'u8[8192]{0}', space=vmem, size = 0x2000, scoped, tag = 'input window, operand 7, single buffered']
    #allocation9 [shape = 's32[1]{0}', space=sflag, size = 0x4, scoped, tag = 'scoped memory for tpu_custom_call.1']
    #allocation10 [shape = 'u8[4096]{0}', space=vmem, size = 0x1000, scoped, tag = 'output window, operand 0']
    #allocation11 [shape = 'u8[4096]{0}', space=vmem, size = 0x1000, scoped, tag = 'output window, operand 1']
    #allocation12 [shape = 's32[2]{0}', space=sflag, size = 0x8, scoped, tag = 'scoped memory for tpu_custom_call.1']
    #allocation13 [shape = 'u8[4096]{0}', space=vmem, size = 0x1000, scoped, tag = 'output window, operand 2']
    %17 = vsyncpa [#allocation3], 0
    %s18 = scalar_lea.sflag [#allocation3], 1
    %19 = vsyncpa %s18, 0
    %20 = vsyncpa [#allocation6], 0
    %21 = vsyncpa [#allocation9], 0
    %22 = vsyncpa [#allocation4], 0
    %s23 = scalar_lea.sflag [#allocation4], 1
    %24 = vsyncpa %s23, 0
    %25 = vsyncpa [#allocation12], 0
    %s26 = scalar_lea.sflag [#allocation12], 1
    %27 = vsyncpa %s26, 0
    loop: start=0, step=1, limit=6
    $region2: #{tpu_custom_call.1} parent=1 // loop_pre_header
      _
    $region3: #{tpu_custom_call.1} parent=1 // loop_header
      %s29 = sphi 0, %s33
      %p30 = scmp.ge.s32.totalorder %s29, 6
      %s36 = sphi 0, %s48
      %s37 = sphi 0, %s44
      %s38 = sphi 0, %s36
      %s39 = sphi 0, %s37
      %s40 = sphi 0, %s38
      %s41 = sphi 0, %s39
      %s53 = sphi 0, %s55
      %s56 = sphi 0, %s53
      %s57 = sphi 0, %s56
      %s73 = sphi 0, %s57
      %s77 = sphi 0, %s77
      %s79 = sphi 0, %s77
      %s80 = sphi 0, %s79
      %s94 = sphi 0, %s80
      %s98 = sphi 0, %s98
      %s100 = sphi 0, %s98
      %s101 = sphi 0, %s100
      %s115 = sphi 0, %s101
      %s119 = sphi 0, %s119
      %s121 = sphi 0, %s119
      %s122 = sphi 0, %s121
      %s136 = sphi 0, %s122
      %s140 = sphi 0, %s140
      %s142 = sphi 0, %s140
      %s143 = sphi 0, %s142
      %s157 = sphi 0, %s143
      %s161 = sphi 0, %s161
      %s163 = sphi 0, %s161
      %s164 = sphi 0, %s163
      %s178 = sphi 0, %s164
      %s182 = sphi 0, %s182
      %s184 = sphi 0, %s182
      %s185 = sphi 0, %s184
      %s199 = sphi 0, %s185
      %s203 = sphi 0, %s203
      %s205 = sphi 0, %s203
      %s206 = sphi 0, %s205
      %s220 = sphi 0, %s206
      %s224 = sphi 0, %s224
      %s226 = sphi 0, %s224
      %s227 = sphi 0, %s226
      %s241 = sphi 0, %s227
      %s249 = sphi 0, %s251
      %s252 = sphi 0, %s249
      %s253 = sphi 0, %s252
      %s269 = sphi 0, %s253
      %s277 = sphi 0, %s279
      %s280 = sphi 0, %s277
      %s281 = sphi 0, %s280
      %s297 = sphi 0, %s281
      %s305 = sphi 0, %s307
      %s308 = sphi 0, %s305
      %s309 = sphi 0, %s308
      %s325 = sphi 0, %s309
    $region4: #{tpu_custom_call.1} parent=1 // loop_header_branch
      %32 = sbr.rel (%p30) target = $region8
    $region5: #{tpu_custom_call.1} parent=1 // loop_body
      %s34 = ssub.s32 %s29, 1
      %s35 = ssub.s32 %s29, 2
      %s42 = sadd.s32 1, %s37
      %p43 = scmp.ge.s32.totalorder %s42, 2
      %s44 = scalar_select %p43, 0, %s42
      %s45 = sadd.s32 1, %s36
      %s46 = scalar_select %p43, %s45, %s36
      %p47 = scmp.ge.s32.totalorder %s46, 2
      %s48 = scalar_select %p47, 0, %s46
      %s49 = ssub.s32 %s36, %s48
      %s50 = ssub.s32 %s37, %s44
      %s51 = sor.u32 %s49, %s50
      %p52 = scmp.eq.s32.totalorder %s51, 0
      %s54 = sadd.s32 %s53, 1
      %s55 = scalar_select %p52, %s53, %s54
      %p58 = pneg %p52
      %p59 = scmp.eq.s32.totalorder %s29, 3
      %p60 = por %p58, %p59
      %p61 = scmp.ne.s32.totalorder %s53, %s56
      %p62 = scmp.eq.s32.totalorder %s29, 0
      %p63 = por %p61, %p62
      %p64 = scmp.ne.s32.totalorder %s53, %s56
      %p65 = scmp.eq.s32.totalorder %s34, 3
      %p66 = por %p64, %p65
      %p67 = scmp.ne.s32.totalorder %s56, %s57
      %p68 = scmp.eq.s32.totalorder %s34, 0
      %p69 = por %p67, %p68
      %p70 = scmp.ne.s32.totalorder %s56, %s57
      %p71 = scmp.eq.s32.totalorder %s35, 3
      %p72 = por %p70, %p71
      %p74 = scmp.ne.s32.totalorder %s57, %s73
      %p75 = scmp.eq.s32.totalorder %s35, 0
      %p76 = por %p74, %p75
      %s78 = sadd.s32 %s77, 1
      %p81 = scmp.eq.s32.totalorder %s29, 3
      %p82 = scmp.ne.s32.totalorder %s77, %s79
      %p83 = scmp.eq.s32.totalorder %s29, 0
      %p84 = por %p82, %p83
      %p85 = scmp.ne.s32.totalorder %s77, %s79
      %p86 = scmp.eq.s32.totalorder %s34, 3
      %p87 = por %p85, %p86
      %p88 = scmp.ne.s32.totalorder %s79, %s80
      %p89 = scmp.eq.s32.totalorder %s34, 0
      %p90 = por %p88, %p89
      %p91 = scmp.ne.s32.totalorder %s79, %s80
      %p92 = scmp.eq.s32.totalorder %s35, 3
      %p93 = por %p91, %p92
      %p95 = scmp.ne.s32.totalorder %s80, %s94
      %p96 = scmp.eq.s32.totalorder %s35, 0
      %p97 = por %p95, %p96
      %s99 = sadd.s32 %s98, 1
      %p102 = scmp.eq.s32.totalorder %s29, 3
      %p103 = scmp.ne.s32.totalorder %s98, %s100
      %p104 = scmp.eq.s32.totalorder %s29, 0
      %p105 = por %p103, %p104
      %p106 = scmp.ne.s32.totalorder %s98, %s100
      %p107 = scmp.eq.s32.totalorder %s34, 3
      %p108 = por %p106, %p107
      %p109 = scmp.ne.s32.totalorder %s100, %s101
      %p110 = scmp.eq.s32.totalorder %s34, 0
      %p111 = por %p109, %p110
      %p112 = scmp.ne.s32.totalorder %s100, %s101
      %p113 = scmp.eq.s32.totalorder %s35, 3
      %p114 = por %p112, %p113
      %p116 = scmp.ne.s32.totalorder %s101, %s115
      %p117 = scmp.eq.s32.totalorder %s35, 0
      %p118 = por %p116, %p117
      %s120 = sadd.s32 %s119, 1
      %p123 = scmp.eq.s32.totalorder %s29, 3
      %p124 = scmp.ne.s32.totalorder %s119, %s121
      %p125 = scmp.eq.s32.totalorder %s29, 0
      %p126 = por %p124, %p125
      %p127 = scmp.ne.s32.totalorder %s119, %s121
      %p128 = scmp.eq.s32.totalorder %s34, 3
      %p129 = por %p127, %p128
      %p130 = scmp.ne.s32.totalorder %s121, %s122
      %p131 = scmp.eq.s32.totalorder %s34, 0
      %p132 = por %p130, %p131
      %p133 = scmp.ne.s32.totalorder %s121, %s122
      %p134 = scmp.eq.s32.totalorder %s35, 3
      %p135 = por %p133, %p134
      %p137 = scmp.ne.s32.totalorder %s122, %s136
      %p138 = scmp.eq.s32.totalorder %s35, 0
      %p139 = por %p137, %p138
      %s141 = sadd.s32 %s140, 1
      %p144 = scmp.eq.s32.totalorder %s29, 3
      %p145 = scmp.ne.s32.totalorder %s140, %s142
      %p146 = scmp.eq.s32.totalorder %s29, 0
      %p147 = por %p145, %p146
      %p148 = scmp.ne.s32.totalorder %s140, %s142
      %p149 = scmp.eq.s32.totalorder %s34, 3
      %p150 = por %p148, %p149
      %p151 = scmp.ne.s32.totalorder %s142, %s143
      %p152 = scmp.eq.s32.totalorder %s34, 0
      %p153 = por %p151, %p152
      %p154 = scmp.ne.s32.totalorder %s142, %s143
      %p155 = scmp.eq.s32.totalorder %s35, 3
      %p156 = por %p154, %p155
      %p158 = scmp.ne.s32.totalorder %s143, %s157
      %p159 = scmp.eq.s32.totalorder %s35, 0
      %p160 = por %p158, %p159
      %s162 = sadd.s32 %s161, 1
      %p165 = scmp.eq.s32.totalorder %s29, 3
      %p166 = scmp.ne.s32.totalorder %s161, %s163
      %p167 = scmp.eq.s32.totalorder %s29, 0
      %p168 = por %p166, %p167
      %p169 = scmp.ne.s32.totalorder %s161, %s163
      %p170 = scmp.eq.s32.totalorder %s34, 3
      %p171 = por %p169, %p170
      %p172 = scmp.ne.s32.totalorder %s163, %s164
      %p173 = scmp.eq.s32.totalorder %s34, 0
      %p174 = por %p172, %p173
      %p175 = scmp.ne.s32.totalorder %s163, %s164
      %p176 = scmp.eq.s32.totalorder %s35, 3
      %p177 = por %p175, %p176
      %p179 = scmp.ne.s32.totalorder %s164, %s178
      %p180 = scmp.eq.s32.totalorder %s35, 0
      %p181 = por %p179, %p180
      %s183 = sadd.s32 %s182, 1
      %p186 = scmp.eq.s32.totalorder %s29, 3
      %p187 = scmp.ne.s32.totalorder %s182, %s184
      %p188 = scmp.eq.s32.totalorder %s29, 0
      %p189 = por %p187, %p188
      %p190 = scmp.ne.s32.totalorder %s182, %s184
      %p191 = scmp.eq.s32.totalorder %s34, 3
      %p192 = por %p190, %p191
      %p193 = scmp.ne.s32.totalorder %s184, %s185
      %p194 = scmp.eq.s32.totalorder %s34, 0
      %p195 = por %p193, %p194
      %p196 = scmp.ne.s32.totalorder %s184, %s185
      %p197 = scmp.eq.s32.totalorder %s35, 3
      %p198 = por %p196, %p197
      %p200 = scmp.ne.s32.totalorder %s185, %s199
      %p201 = scmp.eq.s32.totalorder %s35, 0
      %p202 = por %p200, %p201
      %s204 = sadd.s32 %s203, 1
      %p207 = scmp.eq.s32.totalorder %s29, 3
      %p208 = scmp.ne.s32.totalorder %s203, %s205
      %p209 = scmp.eq.s32.totalorder %s29, 0
      %p210 = por %p208, %p209
      %p211 = scmp.ne.s32.totalorder %s203, %s205
      %p212 = scmp.eq.s32.totalorder %s34, 3
      %p213 = por %p211, %p212
      %p214 = scmp.ne.s32.totalorder %s205, %s206
      %p215 = scmp.eq.s32.totalorder %s34, 0
      %p216 = por %p214, %p215
      %p217 = scmp.ne.s32.totalorder %s205, %s206
      %p218 = scmp.eq.s32.totalorder %s35, 3
      %p219 = por %p217, %p218
      %p221 = scmp.ne.s32.totalorder %s206, %s220
      %p222 = scmp.eq.s32.totalorder %s35, 0
      %p223 = por %p221, %p222
      %s225 = sadd.s32 %s224, 1
      %p228 = scmp.eq.s32.totalorder %s29, 3
      %p229 = scmp.ne.s32.totalorder %s224, %s226
      %p230 = scmp.eq.s32.totalorder %s29, 0
      %p231 = por %p229, %p230
      %p232 = scmp.ne.s32.totalorder %s224, %s226
      %p233 = scmp.eq.s32.totalorder %s34, 3
      %p234 = por %p232, %p233
      %p235 = scmp.ne.s32.totalorder %s226, %s227
      %p236 = scmp.eq.s32.totalorder %s34, 0
      %p237 = por %p235, %p236
      %p238 = scmp.ne.s32.totalorder %s226, %s227
      %p239 = scmp.eq.s32.totalorder %s35, 3
      %p240 = por %p238, %p239
      %p242 = scmp.ne.s32.totalorder %s227, %s241
      %p243 = scmp.eq.s32.totalorder %s35, 0
      %p244 = por %p242, %p243
      %s245 = ssub.s32 %s36, %s48
      %s246 = ssub.s32 %s37, %s44
      %s247 = sor.u32 %s245, %s246
      %p248 = scmp.eq.s32.totalorder %s247, 0
      %s250 = sadd.s32 %s249, 1
      %s251 = scalar_select %p248, %s249, %s250
      %p254 = pneg %p248
      %p255 = scmp.eq.s32.totalorder %s29, 3
      %p256 = por %p254, %p255
      %p257 = scmp.ne.s32.totalorder %s249, %s252
      %p258 = scmp.eq.s32.totalorder %s29, 0
      %p259 = por %p257, %p258
      %p260 = scmp.ne.s32.totalorder %s249, %s252
      %p261 = scmp.eq.s32.totalorder %s34, 3
      %p262 = por %p260, %p261
      %p263 = scmp.ne.s32.totalorder %s252, %s253
      %p264 = scmp.eq.s32.totalorder %s34, 0
      %p265 = por %p263, %p264
      %p266 = scmp.ne.s32.totalorder %s252, %s253
      %p267 = scmp.eq.s32.totalorder %s35, 3
      %p268 = por %p266, %p267
      %p270 = scmp.ne.s32.totalorder %s253, %s269
      %p271 = scmp.eq.s32.totalorder %s35, 0
      %p272 = por %p270, %p271
      %s273 = ssub.s32 %s36, %s48
      %s274 = ssub.s32 %s37, %s44
      %s275 = sor.u32 %s273, %s274
      %p276 = scmp.eq.s32.totalorder %s275, 0
      %s278 = sadd.s32 %s277, 1
      %s279 = scalar_select %p276, %s277, %s278
      %p282 = pneg %p276
      %p283 = scmp.eq.s32.totalorder %s29, 3
      %p284 = por %p282, %p283
      %p285 = scmp.ne.s32.totalorder %s277, %s280
      %p286 = scmp.eq.s32.totalorder %s29, 0
      %p287 = por %p285, %p286
      %p288 = scmp.ne.s32.totalorder %s277, %s280
      %p289 = scmp.eq.s32.totalorder %s34, 3
      %p290 = por %p288, %p289
      %p291 = scmp.ne.s32.totalorder %s280, %s281
      %p292 = scmp.eq.s32.totalorder %s34, 0
      %p293 = por %p291, %p292
      %p294 = scmp.ne.s32.totalorder %s280, %s281
      %p295 = scmp.eq.s32.totalorder %s35, 3
      %p296 = por %p294, %p295
      %p298 = scmp.ne.s32.totalorder %s281, %s297
      %p299 = scmp.eq.s32.totalorder %s35, 0
      %p300 = por %p298, %p299
      %s301 = ssub.s32 %s36, %s48
      %s302 = ssub.s32 %s37, %s44
      %s303 = sor.u32 %s301, %s302
      %p304 = scmp.eq.s32.totalorder %s303, 0
      %s306 = sadd.s32 %s305, 1
      %s307 = scalar_select %p304, %s305, %s306
      %p310 = pneg %p304
      %p311 = scmp.eq.s32.totalorder %s29, 3
      %p312 = por %p310, %p311
      %p313 = scmp.ne.s32.totalorder %s305, %s308
      %p314 = scmp.eq.s32.totalorder %s29, 0
      %p315 = por %p313, %p314
      %p316 = scmp.ne.s32.totalorder %s305, %s308
      %p317 = scmp.eq.s32.totalorder %s34, 3
      %p318 = por %p316, %p317
      %p319 = scmp.ne.s32.totalorder %s308, %s309
      %p320 = scmp.eq.s32.totalorder %s34, 0
      %p321 = por %p319, %p320
      %p322 = scmp.ne.s32.totalorder %s308, %s309
      %p323 = scmp.eq.s32.totalorder %s35, 3
      %p324 = por %p322, %p323
      %p326 = scmp.ne.s32.totalorder %s309, %s325
      %p327 = scmp.eq.s32.totalorder %s35, 0
      %p328 = por %p326, %p327
      %p329 = scmp.le.s32.totalorder 1, %s29
      %p330 = scmp.lt.s32.totalorder %s29, 5
      %p331 = pnand %p329, %p330
      %p332 = pneg %p331
      // Predicated region
      $region9: #{tpu_custom_call.1} parent=5 // pred_check
        _
      $region10: #{tpu_custom_call.1} parent=5 // pred_check_branch
        %334 = sbr.rel (%p331) target = $region12
      $region11: #{tpu_custom_call.1} parent=5 // pred_region
        %s335 = ssub.s32 %s29, 1
        // Predicated region
        $region13: #{tpu_custom_call.1} parent=11 // pred_check
          %p336 = pneg %p90
        $region14: #{tpu_custom_call.1} parent=11 // pred_check_branch
          %338 = sbr.rel (%p336) target = $region16
        $region15: #{tpu_custom_call.1} parent=11 // pred_region
          _
        $region16: #{tpu_custom_call.1} parent=11 // pred_fallthru
          _
        // Predicated region
        $region17: #{tpu_custom_call.1} parent=11 // pred_check
          %p339 = pneg %p111
        $region18: #{tpu_custom_call.1} parent=11 // pred_check_branch
          %341 = sbr.rel (%p339) target = $region20
        $region19: #{tpu_custom_call.1} parent=11 // pred_region
          _
        $region20: #{tpu_custom_call.1} parent=11 // pred_fallthru
          _
        // Predicated region
        $region21: #{tpu_custom_call.1} parent=11 // pred_check
          %p342 = pneg %p132
        $region22: #{tpu_custom_call.1} parent=11 // pred_check_branch
          %344 = sbr.rel (%p342) target = $region24
        $region23: #{tpu_custom_call.1} parent=11 // pred_region
          %s346 = ssub.s32 256, 256
          %347 = vsyncadd [#allocation6], %s346
          %s348 = sshll.u32 [#allocation5], 4
          %s349 = int_to_ptr.vmem [resolvable:$true] %s348
          %354 = dma.hbm_to_vmem [thread:$0]  %s3, 256, %s349, [#allocation6], 64, 64, 4
        $region24: #{tpu_custom_call.1} parent=11 // pred_fallthru
          _
        // Predicated region
        $region25: #{tpu_custom_call.1} parent=11 // pred_check
          %p355 = pneg %p153
        $region26: #{tpu_custom_call.1} parent=11 // pred_check_branch
          %357 = sbr.rel (%p355) target = $region28
        $region27: #{tpu_custom_call.1} parent=11 // pred_region
          %s359 = ssub.s32 16, 16
          %360 = vsyncadd [#allocation6], %s359
          %s362 = sshll.u32 [#allocation7], 4
          %s363 = int_to_ptr.vmem [resolvable:$true] %s362
          %365 = dma.hbm_to_vmem [thread:$0]  %s4, 16, %s363, [#allocation6]
        $region28: #{tpu_custom_call.1} parent=11 // pred_fallthru
          _
        // Predicated region
        $region29: #{tpu_custom_call.1} parent=11 // pred_check
          %p366 = pneg %p174
        $region30: #{tpu_custom_call.1} parent=11 // pred_check_branch
          %368 = sbr.rel (%p366) target = $region32
        $region31: #{tpu_custom_call.1} parent=11 // pred_region
          _
        $region32: #{tpu_custom_call.1} parent=11 // pred_fallthru
          _
        // Predicated region
        $region33: #{tpu_custom_call.1} parent=11 // pred_check
          %p369 = pneg %p195
        $region34: #{tpu_custom_call.1} parent=11 // pred_check_branch
          %371 = sbr.rel (%p369) target = $region36
        $region35: #{tpu_custom_call.1} parent=11 // pred_region
          _
        $region36: #{tpu_custom_call.1} parent=11 // pred_fallthru
          _
        // Predicated region
        $region37: #{tpu_custom_call.1} parent=11 // pred_check
          %p372 = pneg %p216
        $region38: #{tpu_custom_call.1} parent=11 // pred_check_branch
          %374 = sbr.rel (%p372) target = $region40
        $region39: #{tpu_custom_call.1} parent=11 // pred_region
          %s376 = ssub.s32 256, 256
          %377 = vsyncadd [#allocation9], %s376
          %s378 = sshll.u32 [#allocation8], 4
          %s379 = int_to_ptr.vmem [resolvable:$true] %s378
          %384 = dma.hbm_to_vmem [thread:$0]  %s7, 256, %s379, [#allocation9], 64, 64, 4
        $region40: #{tpu_custom_call.1} parent=11 // pred_fallthru
          _
        // Predicated region
        $region41: #{tpu_custom_call.1} parent=11 // pred_check
          %p385 = pneg %p237
        $region42: #{tpu_custom_call.1} parent=11 // pred_check_branch
          %387 = sbr.rel (%p385) target = $region44
        $region43: #{tpu_custom_call.1} parent=11 // pred_region
          _
        $region44: #{tpu_custom_call.1} parent=11 // pred_fallthru
          _
      $region12: #{tpu_custom_call.1} parent=5 // pred_fallthru
        _
      %p388 = scmp.lt.s32.totalorder %s29, 4
      // Predicated region
      $region45: #{tpu_custom_call.1} parent=5 // pred_check
        %p389 = pneg %p388
      $region46: #{tpu_custom_call.1} parent=5 // pred_check_branch
        %391 = sbr.rel (%p389) target = $region48
      $region47: #{tpu_custom_call.1} parent=5 // pred_region
        // Predicated region
        $region49: #{tpu_custom_call.1} parent=47 // pred_check
          %p392 = pneg %p63
        $region50: #{tpu_custom_call.1} parent=47 // pred_check_branch
          %394 = sbr.rel (%p392) target = $region52
        $region51: #{tpu_custom_call.1} parent=47 // pred_region
          %s395 = sand.u32 %s53, 1
          %s396 = scalar_lea.sflag [#allocation3], %s395
          %s397 = sand.u32 %s53, 1
          %s398 = smul.addr %s397, 8
          %s399 = scalar_lea.vmem [#allocation2], %s398
          %s401 = ssub.s32 128, 128
          %402 = vsyncadd %s396, %s401
          %s403 = smul.addr %s36, 2
          %s404 = sadd.s32 %s37, %s403
          %s405 = smul.addr %s404, 128
          %s406 = scalar_lea.hbm %s0, %s405
          %s408 = sshll.u32 %s399, 4
          %s409 = int_to_ptr.vmem [resolvable:$true] %s408
          %411 = dma.hbm_to_vmem [thread:$0]  %s406, 128, %s409, %s396
        $region52: #{tpu_custom_call.1} parent=47 // pred_fallthru
          _
      $region48: #{tpu_custom_call.1} parent=5 // pred_fallthru
        _
      %p412 = scmp.le.s32.totalorder 1, %s29
      %p413 = scmp.lt.s32.totalorder %s29, 5
      %p414 = pnand %p412, %p413
      %p415 = pneg %p414
      // Predicated region
      $region53: #{tpu_custom_call.1} parent=5 // pred_check
        _
      $region54: #{tpu_custom_call.1} parent=5 // pred_check_branch
        %417 = sbr.rel (%p414) target = $region56
      $region55: #{tpu_custom_call.1} parent=5 // pred_region
        %s418 = ssub.s32 %s29, 1
        %s419 = sand.u32 %s56, 1
        %s420 = scalar_lea.sflag [#allocation3], %s419
        %s421 = sand.u32 %s56, 1
        %s422 = smul.addr %s421, 8
        %s423 = scalar_lea.vmem [#allocation2], %s422
        // Predicated region
        $region57: #{tpu_custom_call.1} parent=55 // pred_check
          %p424 = pneg %p69
        $region58: #{tpu_custom_call.1} parent=55 // pred_check_branch
          %426 = sbr.rel (%p424) target = $region60
        $region59: #{tpu_custom_call.1} parent=55 // pred_region
          %427 = dma.done %s420, 128
        $region60: #{tpu_custom_call.1} parent=55 // pred_fallthru
          _
        // Predicated region
        $region61: #{tpu_custom_call.1} parent=55 // pred_check
          %p428 = pneg %p132
        $region62: #{tpu_custom_call.1} parent=55 // pred_check_branch
          %430 = sbr.rel (%p428) target = $region64
        $region63: #{tpu_custom_call.1} parent=55 // pred_region
          %431 = dma.done [#allocation6], 256
        $region64: #{tpu_custom_call.1} parent=55 // pred_fallthru
          _
        // Predicated region
        $region65: #{tpu_custom_call.1} parent=55 // pred_check
          %p432 = pneg %p153
        $region66: #{tpu_custom_call.1} parent=55 // pred_check_branch
          %434 = sbr.rel (%p432) target = $region68
        $region67: #{tpu_custom_call.1} parent=55 // pred_region
          %435 = dma.done [#allocation6], 16
        $region68: #{tpu_custom_call.1} parent=55 // pred_fallthru
          _
        // Predicated region
        $region69: #{tpu_custom_call.1} parent=55 // pred_check
          %p436 = pneg %p216
        $region70: #{tpu_custom_call.1} parent=55 // pred_check_branch
          %438 = sbr.rel (%p436) target = $region72
        $region71: #{tpu_custom_call.1} parent=55 // pred_region
          %439 = dma.done [#allocation9], 256
        $region72: #{tpu_custom_call.1} parent=55 // pred_fallthru
          _
        %s440 = sand.u32 %s56, 1
        %s441 = scalar_lea.sflag [#allocation3], %s440
        %s442 = sand.u32 %s56, 1
        %s443 = smul.addr %s442, 8
        %s444 = scalar_lea.vmem [#allocation2], %s443
        %p445 = pneg %p69
        %p446 = pneg %p66
        %p447 = pneg %p90
        %p448 = pneg %p87
        %p449 = pneg %p111
        %p450 = pneg %p108
        %p451 = pneg %p132
        %p452 = pneg %p129
        %p453 = pneg %p153
        %p454 = pneg %p150
        %p455 = pneg %p174
        %p456 = pneg %p171
        %p457 = pneg %p195
        %p458 = pneg %p192
        %p459 = pneg %p216
        %p460 = pneg %p213
        %p461 = pneg %p237
        %p462 = pneg %p234
        %p463 = pneg %p265
        %p464 = pneg %p262
        %s465 = sand.u32 %s252, 1
        %s466 = scalar_lea.sflag [#allocation4], %s465
        %s467 = sand.u32 %s252, 1
        %s468 = smul.addr %s467, 4
        %s469 = scalar_lea.vmem [#allocation10], %s468
        %p470 = pneg %p293
        %p471 = pneg %p290
        %s472 = sand.u32 %s34, 1
        %s473 = scalar_lea.sflag [#allocation12], %s472
        %s474 = sand.u32 %s280, 1
        %s475 = smul.addr %s474, 4
        %s476 = scalar_lea.vmem [#allocation11], %s475
        %p477 = pneg %p321
        %p478 = pneg %p318
        %s479 = sand.u32 %s34, 1
        %s480 = scalar_lea.sflag [#allocation12], %s479
        %s481 = sand.u32 %s308, 1
        %s482 = smul.addr %s481, 4
        %s483 = scalar_lea.vmem [#allocation13], %s482
        %v485 = vld [vmem:[%s423] sm:$0xff]
        %v486 = vld [vmem:[%s1] sm:$0x1]
        %v487 = vld [vmem:[%s2] sm:$0x1]
        %vm488 = vcmask 261120
        %v489 = vsel %vm488, %v485, 0.0
        %490 = vadd.xlane.f32.xlu0 %v489
        %v491 = vpop.xlane.xlu0 %490
        %v492 = vrcp.pop 32.0
        %v493 = vmul.f32 %v491, %v492
        %v494 = vsub.f32 %v485, %v493
        %v495 = vmul.f32 %v494, %v494
        %v496 = vsel %vm488, %v495, 0.0
        %497 = vadd.xlane.f32.xlu0 %v496
        %v498 = vpop.xlane.xlu0 %497
        %v499 = vmul.f32 %v498, %v492
        %v500 = vadd.f32 %v499, 1e-05
        %v501 = vrsqrt.pop %v500
        %v502 = vmul.f32 %v494, %v501
        %v504 = vlaneseq
        %v505 = vshrl.u32 %v504, 7
        %v506 = vsub.s32 0, %v505
        %v507 = vrot.slane %v486, %v506
        %v509 = vmul.f32 %v502, %v507
        %v511 = vlaneseq
        %v512 = vshrl.u32 %v511, 7
        %v513 = vsub.s32 0, %v512
        %v514 = vrot.slane %v487, %v513
        %v516 = vadd.f32 %v509, %v514
        %v517 = vpack.c.bf16 %v516, %v516
        %v518 = vld [vmem:[#allocation5] sm:$0xf]
        %v519 = vld [vmem:[#allocation5 + $0x4] sm:$0xf]
        %v520 = vld [vmem:[#allocation5 + $0x8] sm:$0xf]
        %v521 = vld [vmem:[#allocation5 + $0xc] sm:$0xf]
        %v522 = vld [vmem:[#allocation7] sm:$0x1]
        %v524 = vlaneseq
        %v525 = vshrl.u32 %v524, 7
        %v526 = vsub.s32 0, %v525
        %v527 = vrot.slane %v522, %v526
        %v533 = vunpack.c.l.b16 %v518
        %v534 = vunpack.c.l.b16 %v519
        %v535 = vunpack.c.l.b16 %v520
        %v536 = vunpack.c.l.b16 %v521
        %v537 = vpack.c.b16 %v534, %v533
        %v538 = vpack.c.b16 %v536, %v535
        %v542 = vsel %vm488, %v517, 0
        %544 = vmatprep.subr.bf16.mxu0 0
        %545 = vmatpush1.bf16.msra.mxu0 %v537
        %546 = vmatprep.subr.bf16.mxu0 0
        %547 = vmatpush1.bf16.msra.mxu0 %v538
        %548 = vmatprep.subr.bf16.mxu0 0
        %549 = vmatpush1.bf16.msra.mxu0 0
        %550 = vmatprep.subr.bf16.mxu0 0
        %551 = vmatpush1.bf16.msra.mxu0 0
        %552 = vmatprep.subr.bf16.mxu0 0
        %553 = vmatpush1.bf16.msra.mxu0 0
        %554 = vmatprep.subr.bf16.mxu0 0
        %555 = vmatpush1.bf16.msra.mxu0 0
        %556 = vmatprep.subr.bf16.mxu0 0
        %557 = vmatpush1.bf16.msra.mxu0 0
        %558 = vmatprep.subr.bf16.mxu0 0
        %559 = vmatpush1.bf16.msra.mxu0 0
        %560 = vmatprep.subr.bf16.mxu0 0
        %561 = vmatpush1.bf16.msra.mxu0 0
        %562 = vmatprep.subr.bf16.mxu0 0
        %563 = vmatpush1.bf16.msra.mxu0 0
        %564 = vmatprep.subr.bf16.mxu0 0
        %565 = vmatpush1.bf16.msra.mxu0 0
        %566 = vmatprep.subr.bf16.mxu0 0
        %567 = vmatpush1.bf16.msra.mxu0 0
        %568 = vmatprep.subr.bf16.mxu0 0
        %569 = vmatpush1.bf16.msra.mxu0 0
        %570 = vmatprep.subr.bf16.mxu0 0
        %571 = vmatpush1.bf16.msra.mxu0 0
        %572 = vmatprep.subr.bf16.mxu0 0
        %573 = vmatpush1.bf16.msra.mxu0 0
        %574 = vmatprep.subr.bf16.mxu0 0
        %575 = vmatpush1.bf16.msra.mxu0 0
        %576 = vmatprep.mubr.bf16.mxu0 0
        %577 = vmatmul.mubr.bf16.gmra.mrb[0].mxu0 %v542
        %v578 = vpop.f32.mrb[0].mxu0
        %v579 = vadd.f32 %v527, %v578
        %v580 = vpop.f32.mrb[0].mxu0
        %v581 = vpop.f32.mrb[0].mxu0
        %v582 = vpop.f32.mrb[0].mxu0
        %583 = vdwg.mxu0
        %v584 = vld [vmem:[%s5] sm:$0xf]
        %v585 = vld [vmem:[%s5 + $0x4] sm:$0xf]
        %v586 = vld [vmem:[%s5 + $0x8] sm:$0xf]
        %v587 = vld [vmem:[%s5 + $0xc] sm:$0xf]
        %v588 = vld [vmem:[%s6] sm:$0x1]
        %v590 = vlaneseq
        %v591 = vshrl.u32 %v590, 7
        %v592 = vsub.s32 0, %v591
        %v593 = vrot.slane %v588, %v592
        %v599 = vunpack.c.l.b16 %v584
        %v600 = vunpack.c.l.b16 %v585
        %v601 = vunpack.c.l.b16 %v586
        %v602 = vunpack.c.l.b16 %v587
        %v603 = vpack.c.b16 %v600, %v599
        %v604 = vpack.c.b16 %v602, %v601
        %607 = vmatprep.subr.bf16.mxu0 0
        %608 = vmatpush1.bf16.msra.mxu0 %v603
        %609 = vmatprep.subr.bf16.mxu0 0
        %610 = vmatpush1.bf16.msra.mxu0 %v604
        %611 = vmatprep.subr.bf16.mxu0 0
        %612 = vmatpush1.bf16.msra.mxu0 0
        %613 = vmatprep.subr.bf16.mxu0 0
        %614 = vmatpush1.bf16.msra.mxu0 0
        %615 = vmatprep.subr.bf16.mxu0 0
        %616 = vmatpush1.bf16.msra.mxu0 0
        %617 = vmatprep.subr.bf16.mxu0 0
        %618 = vmatpush1.bf16.msra.mxu0 0
        %619 = vmatprep.subr.bf16.mxu0 0
        %620 = vmatpush1.bf16.msra.mxu0 0
        %621 = vmatprep.subr.bf16.mxu0 0
        %622 = vmatpush1.bf16.msra.mxu0 0
        %623 = vmatprep.subr.bf16.mxu0 0
        %624 = vmatpush1.bf16.msra.mxu0 0
        %625 = vmatprep.subr.bf16.mxu0 0
        %626 = vmatpush1.bf16.msra.mxu0 0
        %627 = vmatprep.subr.bf16.mxu0 0
        %628 = vmatpush1.bf16.msra.mxu0 0
        %629 = vmatprep.subr.bf16.mxu0 0
        %630 = vmatpush1.bf16.msra.mxu0 0
        %631 = vmatprep.subr.bf16.mxu0 0
        %632 = vmatpush1.bf16.msra.mxu0 0
        %633 = vmatprep.subr.bf16.mxu0 0
        %634 = vmatpush1.bf16.msra.mxu0 0
        %635 = vmatprep.subr.bf16.mxu0 0
        %636 = vmatpush1.bf16.msra.mxu0 0
        %637 = vmatprep.subr.bf16.mxu0 0
        %638 = vmatpush1.bf16.msra.mxu0 0
        %639 = vmatprep.mubr.bf16.mxu0 0
        %640 = vmatmul.mubr.bf16.gmra.mrb[0].mxu0 %v542
        %v641 = vpop.f32.mrb[0].mxu0
        %v642 = vadd.f32 %v593, %v641
        %v643 = vpop.f32.mrb[0].mxu0
        %v644 = vpop.f32.mrb[0].mxu0
        %v645 = vpop.f32.mrb[0].mxu0
        %646 = vdwg.mxu0
        %v647 = vld [vmem:[#allocation8] sm:$0xf]
        %v648 = vld [vmem:[#allocation8 + $0x4] sm:$0xf]
        %v649 = vld [vmem:[#allocation8 + $0x8] sm:$0xf]
        %v650 = vld [vmem:[#allocation8 + $0xc] sm:$0xf]
        %v651 = vld [vmem:[%s8] sm:$0x1]
        %v653 = vlaneseq
        %v654 = vshrl.u32 %v653, 7
        %v655 = vsub.s32 0, %v654
        %v656 = vrot.slane %v651, %v655
        %v662 = vunpack.c.l.b16 %v647
        %v663 = vunpack.c.l.b16 %v648
        %v664 = vunpack.c.l.b16 %v649
        %v665 = vunpack.c.l.b16 %v650
        %v666 = vpack.c.b16 %v663, %v662
        %v667 = vpack.c.b16 %v665, %v664
        %670 = vmatprep.subr.bf16.mxu0 0
        %671 = vmatpush1.bf16.msra.mxu0 %v666
        %672 = vmatprep.subr.bf16.mxu0 0
        %673 = vmatpush1.bf16.msra.mxu0 %v667
        %674 = vmatprep.subr.bf16.mxu0 0
        %675 = vmatpush1.bf16.msra.mxu0 0
        %676 = vmatprep.subr.bf16.mxu0 0
        %677 = vmatpush1.bf16.msra.mxu0 0
        %678 = vmatprep.subr.bf16.mxu0 0
        %679 = vmatpush1.bf16.msra.mxu0 0
        %680 = vmatprep.subr.bf16.mxu0 0
        %681 = vmatpush1.bf16.msra.mxu0 0
        %682 = vmatprep.subr.bf16.mxu0 0
        %683 = vmatpush1.bf16.msra.mxu0 0
        %684 = vmatprep.subr.bf16.mxu0 0
        %685 = vmatpush1.bf16.msra.mxu0 0
        %686 = vmatprep.subr.bf16.mxu0 0
        %687 = vmatpush1.bf16.msra.mxu0 0
        %688 = vmatprep.subr.bf16.mxu0 0
        %689 = vmatpush1.bf16.msra.mxu0 0
        %690 = vmatprep.subr.bf16.mxu0 0
        %691 = vmatpush1.bf16.msra.mxu0 0
        %692 = vmatprep.subr.bf16.mxu0 0
        %693 = vmatpush1.bf16.msra.mxu0 0
        %694 = vmatprep.subr.bf16.mxu0 0
        %695 = vmatpush1.bf16.msra.mxu0 0
        %696 = vmatprep.subr.bf16.mxu0 0
        %697 = vmatpush1.bf16.msra.mxu0 0
        %698 = vmatprep.subr.bf16.mxu0 0
        %699 = vmatpush1.bf16.msra.mxu0 0
        %700 = vmatprep.subr.bf16.mxu0 0
        %701 = vmatpush1.bf16.msra.mxu0 0
        %702 = vmatprep.mubr.bf16.mxu0 0
        %703 = vmatmul.mubr.bf16.gmra.mrb[0].mxu0 %v542
        %v704 = vpop.f32.mrb[0].mxu0
        %v705 = vadd.f32 %v656, %v704
        %v706 = vpop.f32.mrb[0].mxu0
        %v707 = vpop.f32.mrb[0].mxu0
        %v708 = vpop.f32.mrb[0].mxu0
        %709 = vdwg.mxu0
        %v710 = vmul.f32 %v579, 0.35355338
        %v711 = vpack.c.bf16 %v710, %v710
        %vm712 = vcmask 257024
        %713 = vst.msk [vmem:[%s469] sm:$0xf] %vm712, %v711
        %v714 = vpack.c.bf16 %v642, %v642
        %715 = vst.msk [vmem:[%s476] sm:$0xf] %vm712, %v714
        %v716 = vpack.c.bf16 %v705, %v705
        %717 = vst.msk [vmem:[%s483] sm:$0xf] %vm712, %v716
        %s718 = sand.u32 %s252, 1
        %s719 = scalar_lea.sflag [#allocation4], %s718
        %s720 = sand.u32 %s252, 1
        %s721 = smul.addr %s720, 4
        %s722 = scalar_lea.vmem [#allocation10], %s721
        %s723 = sand.u32 %s34, 1
        %s724 = scalar_lea.sflag [#allocation12], %s723
        %s725 = sand.u32 %s280, 1
        %s726 = smul.addr %s725, 4
        %s727 = scalar_lea.vmem [#allocation11], %s726
        %s728 = sand.u32 %s34, 1
        %s729 = scalar_lea.sflag [#allocation12], %s728
        %s730 = sand.u32 %s308, 1
        %s731 = smul.addr %s730, 4
        %s732 = scalar_lea.vmem [#allocation13], %s731
        // Predicated region
        $region73: #{tpu_custom_call.1} parent=55 // pred_check
          %p733 = pneg %p262
        $region74: #{tpu_custom_call.1} parent=55 // pred_check_branch
          %735 = sbr.rel (%p733) target = $region76
        $region75: #{tpu_custom_call.1} parent=55 // pred_region
          %s737 = ssub.s32 64, 64
          %738 = vsyncadd %s719, %s737
          %s739 = smul.addr %s38, 2
          %s740 = sadd.s32 %s39, %s739
          %s741 = smul.addr %s740, 64
          %s742 = scalar_lea.hbm %s9, %s741
          %s744 = sshll.u32 %s722, 4
          %s745 = int_to_ptr.vmem [resolvable:$true] %s744
          %747 = dma.vmem_to_hbm [thread:$0]  %s745, 64, %s742, %s719
        $region76: #{tpu_custom_call.1} parent=55 // pred_fallthru
          _
        // Predicated region
        $region77: #{tpu_custom_call.1} parent=55 // pred_check
          %p748 = pneg %p290
        $region78: #{tpu_custom_call.1} parent=55 // pred_check_branch
          %750 = sbr.rel (%p748) target = $region80
        $region79: #{tpu_custom_call.1} parent=55 // pred_region
          %s752 = ssub.s32 64, 64
          %753 = vsyncadd %s724, %s752
          %s754 = smul.addr %s38, 2
          %s755 = sadd.s32 %s39, %s754
          %s756 = smul.addr %s755, 64
          %s757 = scalar_lea.hbm %s10, %s756
          %s759 = sshll.u32 %s727, 4
          %s760 = int_to_ptr.vmem [resolvable:$true] %s759
          %762 = dma.vmem_to_hbm [thread:$0]  %s760, 64, %s757, %s724
        $region80: #{tpu_custom_call.1} parent=55 // pred_fallthru
          _
        // Predicated region
        $region81: #{tpu_custom_call.1} parent=55 // pred_check
          %p763 = pneg %p318
        $region82: #{tpu_custom_call.1} parent=55 // pred_check_branch
          %765 = sbr.rel (%p763) target = $region84
        $region83: #{tpu_custom_call.1} parent=55 // pred_region
          %s767 = ssub.s32 64, 64
          %768 = vsyncadd %s729, %s767
          %s769 = smul.addr %s38, 2
          %s770 = sadd.s32 %s39, %s769
          %s771 = smul.addr %s770, 64
          %s772 = scalar_lea.hbm %s11, %s771
          %s774 = sshll.u32 %s732, 4
          %s775 = int_to_ptr.vmem [resolvable:$true] %s774
          %777 = dma.vmem_to_hbm [thread:$0]  %s775, 64, %s772, %s729
        $region84: #{tpu_custom_call.1} parent=55 // pred_fallthru
          _
      $region56: #{tpu_custom_call.1} parent=5 // pred_fallthru
        _
      %p778 = scmp.le.s32.totalorder 2, %s29
      // Predicated region
      $region85: #{tpu_custom_call.1} parent=5 // pred_check
        %p779 = pneg %p778
      $region86: #{tpu_custom_call.1} parent=5 // pred_check_branch
        %781 = sbr.rel (%p779) target = $region88
      $region87: #{tpu_custom_call.1} parent=5 // pred_region
        %s782 = ssub.s32 %s29, 2
        // Predicated region
        $region89: #{tpu_custom_call.1} parent=87 // pred_check
          %p783 = pneg %p268
        $region90: #{tpu_custom_call.1} parent=87 // pred_check_branch
          %785 = sbr.rel (%p783) target = $region92
        $region91: #{tpu_custom_call.1} parent=87 // pred_region
          %s786 = sand.u32 %s253, 1
          %s787 = scalar_lea.sflag [#allocation4], %s786
          %s788 = sand.u32 %s253, 1
          %s789 = smul.addr %s788, 4
          %s790 = scalar_lea.vmem [#allocation10], %s789
          %791 = dma.done %s787, 64
        $region92: #{tpu_custom_call.1} parent=87 // pred_fallthru
          _
        // Predicated region
        $region93: #{tpu_custom_call.1} parent=87 // pred_check
          %p792 = pneg %p296
        $region94: #{tpu_custom_call.1} parent=87 // pred_check_branch
          %794 = sbr.rel (%p792) target = $region96
        $region95: #{tpu_custom_call.1} parent=87 // pred_region
          %s795 = sand.u32 %s35, 1
          %s796 = scalar_lea.sflag [#allocation12], %s795
          %s797 = sand.u32 %s281, 1
          %s798 = smul.addr %s797, 4
          %s799 = scalar_lea.vmem [#allocation11], %s798
          %800 = dma.done %s796, 64
        $region96: #{tpu_custom_call.1} parent=87 // pred_fallthru
          _
        // Predicated region
        $region97: #{tpu_custom_call.1} parent=87 // pred_check
          %p801 = pneg %p324
        $region98: #{tpu_custom_call.1} parent=87 // pred_check_branch
          %803 = sbr.rel (%p801) target = $region100
        $region99: #{tpu_custom_call.1} parent=87 // pred_region
          %s804 = sand.u32 %s35, 1
          %s805 = scalar_lea.sflag [#allocation12], %s804
          %s806 = sand.u32 %s309, 1
          %s807 = smul.addr %s806, 4
          %s808 = scalar_lea.vmem [#allocation13], %s807
          %809 = dma.done %s805, 64
        $region100: #{tpu_custom_call.1} parent=87 // pred_fallthru
          _
      $region88: #{tpu_custom_call.1} parent=5 // pred_fallthru
        _
    $region6: #{tpu_custom_call.1} parent=1 // loop_footer
      %s33 = sadd.s32 1, %s29
    $region7: #{tpu_custom_call.1} parent=1 // loop_footer_branch
      %28 = sbr.rel target = $region3
    $region8: #{tpu_custom_call.1} parent=1 // loop_exit
      _
    %810 = vsyncpa [#allocation3], 1
    %s811 = scalar_lea.sflag [#allocation3], 1
    %812 = vsyncpa %s811, 1
    %813 = vsyncpa [#allocation6], 1
    %814 = vsyncpa [#allocation9], 1
    %815 = vsyncpa [#allocation4], 1
    %s816 = scalar_lea.sflag [#allocation4], 1
    %817 = vsyncpa %s816, 1
    %818 = vsyncpa [#allocation12], 1
    %s819 = scalar_lea.sflag [#allocation12], 1
    %820 = vsyncpa %s819, 1

</llo_original>
